<compile_context>
chip_gen: v7x
topology: tpu7x:2x2x1
jax: 0.10.0
libtpu: 0.0.40
codegen_flags: <defaults>
</compile_context>

<pallas_src>
import functools
import math

import jax
import jax.numpy as jnp
from jax.experimental import pallas as pl
from jax.experimental.pallas import tpu as pltpu


# ---------------------------------------------------------------------------
# Kernel (feature-major: activations are [features, batch_tile])
# ---------------------------------------------------------------------------
def encoder_conv_kernel(x_ref, w1_ref, b1_ref, w2_ref, b2_ref, wh_ref, bh_ref,
                        eps_ref, out_ref, *, latent_dim):
    """One batch tile (columns) of the full EncoderConv forward."""
    L = latent_dim

    x = x_ref[...]                                            # [in_dim, TB] f32

    # conv_input (length 1 -> 2, k=2, pad=1) packed as one matmul; ReLU on VPU.
    a = jnp.maximum(
        jnp.dot(w1_ref[...], x, preferred_element_type=jnp.float32)
        + b1_ref[...], 0.0)                                   # [2*C1, TB]

    # conv_hidden (length 2 -> 3) as one block-banded matmul; tanh on EUP.
    # TODO(synk): on v6e/v7x a bf16 tanh roughly doubles EUP throughput; kept
    # f32 so v5e (no bf16 VPU/EUP) and accuracy stay unchanged.
    h = jnp.tanh(
        jnp.dot(w2_ref[...], a, preferred_element_type=jnp.float32)
        + b2_ref[...])                                        # [3*C2, TB]

    # fused heads: [mean ; log_var] = WH @ h + bh  ->  [2L, TB]
    mv = (jnp.dot(wh_ref[...], h, preferred_element_type=jnp.float32)
          + bh_ref[...])
    mean = mv[:L, :]
    log_var = mv[L:, :]

    var = jnp.exp(0.5 * log_var)        # (PyTorch naming: this is the std-dev)
    z = mean + eps_ref[...] * var

    # Sublane-stacked, lane-dense store: rows [z | mean | var | log_var].
    out_ref[...] = jnp.concatenate([z, mean, var, log_var], axis=0)


# ---------------------------------------------------------------------------
# Wrapper
# ---------------------------------------------------------------------------
def encoder_conv_forward(x, packed, eps, *, latent_dim, block_b=None):
    """Run the full EncoderConv forward as a single batch-tiled Pallas call.

    x:      [B, input_dim] f32
    packed: packed/fused parameters from pack_params()
    eps:    [B, latent_dim] f32 standard-normal noise (randn_like)
    Returns (z, mean, var, log_var), each [B, latent_dim] f32.
    """
    B, in_dim = x.shape
    L = latent_dim
    w1, b1 = packed["W1"], packed["B1"]
    w2, b2 = packed["W2"], packed["B2"]
    wh, bh = packed["WH"], packed["BH"]

    # Feature-major (batch-on-lanes) views -- layout plumbing only.
    x_t = x.T                                                 # [in_dim, B]
    eps_t = eps.T                                             # [L, B]

    if block_b is None:
        if B <= 2048:
            block_b = B                       # single step; working set is tiny
        else:
            # >= 2 lane-aligned steps (v7x megacore) with 2048-8192-col tiles.
            block_b = int(min(8192, 256 * pl.cdiv(pl.cdiv(B, 2), 256)))
    grid = (pl.cdiv(B, block_b),)

    def batch_spec(rows):
        return pl.BlockSpec((rows, block_b), lambda i: (0, i))

    def resident_spec(arr):
        return pl.BlockSpec(arr.shape, lambda i: (0,) * arr.ndim)

    kernel = functools.partial(encoder_conv_kernel, latent_dim=L)

    cost = pl.CostEstimate(
        flops=2 * B * int(w1.size + w2.size + wh.size),
        transcendentals=B * int(w2.shape[0] + L),             # tanh + exp
        bytes_accessed=4 * int(x.size + eps.size + B * 4 * L
                               + w1.size + b1.size + w2.size + b2.size
                               + wh.size + bh.size),
    )

    out = pl.pallas_call(
        kernel,
        out_shape=jax.ShapeDtypeStruct((4 * L, B), jnp.float32),
        grid=grid,
        in_specs=[
            batch_spec(in_dim),                      # x^T   (batch-tiled, lane-dense)
            resident_spec(w1), resident_spec(b1),    # conv_input  (VMEM-resident)
            resident_spec(w2), resident_spec(b2),    # conv_hidden (VMEM-resident)
            resident_spec(wh), resident_spec(bh),    # fused heads (VMEM-resident)
            batch_spec(L),                           # eps^T (batch-tiled)
        ],
        out_specs=batch_spec(4 * L),
        compiler_params=pltpu.CompilerParams(
            dimension_semantics=("parallel",),       # shards batch on v7x TCs
            vmem_limit_bytes=32 * 1024 * 1024,       # safe on v5e/v6e/v7x
        ),
        cost_estimate=cost,
    )(x_t, w1, b1, w2, b2, wh, bh, eps_t)

    z = out[0 * L:1 * L, :].T
    mean = out[1 * L:2 * L, :].T
    var = out[2 * L:3 * L, :].T
    log_var = out[3 * L:4 * L, :].T
    return z, mean, var, log_var


# ---------------------------------------------------------------------------
# Parameters (PyTorch layouts) and packing into feature-major matmul form
# ---------------------------------------------------------------------------
def init_params(key, input_dim=4, latent_dim=1):
    """PyTorch-default-style uniform init in PyTorch layouts:
    Conv1d weight [out, in, k], Linear weight [out, in]."""
    C1, C2 = 2 * input_dim, 4 * input_dim
    ks = jax.random.split(key, 8)

    def u(k, shape, fan_in):
        bound = 1.0 / math.sqrt(fan_in)
        return jax.random.uniform(k, shape, jnp.float32, -bound, bound)

    return dict(
        w_conv1=u(ks[0], (C1, input_dim, 2), input_dim * 2),
        b_conv1=u(ks[1], (C1,), input_dim * 2),
        w_conv2=u(ks[2], (C2, C1, 2), C1 * 2),
        b_conv2=u(ks[3], (C2,), C1 * 2),
        w_mean=u(ks[4], (latent_dim, 3 * C2), 3 * C2),
        b_mean=u(ks[5], (latent_dim,), 3 * C2),
        w_logvar=u(ks[6], (latent_dim, 3 * C2), 3 * C2),
        b_logvar=u(ks[7], (latent_dim,), 3 * C2),
    )


def pack_params(params):
    """Rewrite the k=2/pad=1 convs as dense matmuls (feature-major, W @ x) and
    fuse the two heads. Everything stays f32: the weights are VMEM-resident so
    bf16 storage would save no bandwidth on this HBM-bound kernel."""
    w1 = params["w_conv1"]                    # [C1, Cin, 2]
    w2 = params["w_conv2"]                    # [C2, C1, 2]
    C2 = w2.shape[0]

    # conv_input on a length-1, padding-1 signal (a = W1 @ x):
    #   a[t=0] = w1[:, :, 1] @ x ;  a[t=1] = w1[:, :, 0] @ x
    W1 = jnp.concatenate([w1[:, :, 1], w1[:, :, 0]], axis=0)          # [2*C1, Cin]
    B1 = jnp.concatenate([params["b_conv1"]] * 2)[:, None]            # [2*C1, 1]

    # conv_hidden on the packed length-2 activation [a0 ; a1]:
    #   h0 = k1 @ a0 ; h1 = k0 @ a0 + k1 @ a1 ; h2 = k0 @ a1   (k_t = w2[:, :, t])
    k0, k1 = w2[:, :, 0], w2[:, :, 1]
    Z = jnp.zeros_like(k0)
    W2 = jnp.concatenate([jnp.concatenate([k1, Z], axis=1),
                          jnp.concatenate([k0, k1], axis=1),
                          jnp.concatenate([Z, k0], axis=1)], axis=0)  # [3*C2, 2*C1]
    B2 = jnp.concatenate([params["b_conv2"]] * 3)[:, None]            # [3*C2, 1]

    # The heads act on PyTorch flatten order (feature index c*3 + t); packed h
    # rows use index t*C2 + c, so permute the head columns once at pack time
    # and fuse mean|log_var into a single [2L, 3*C2] weight.
    def to_time_major(w):                     # w: [L, 3*C2], cols indexed c*3+t
        Lh = w.shape[0]
        return w.reshape(Lh, C2, 3).transpose(0, 2, 1).reshape(Lh, 3 * C2)

    WH = jnp.concatenate([to_time_major(params["w_mean"]),
                          to_time_major(params["w_logvar"])], axis=0)     # [2L, 3*C2]
    BH = jnp.concatenate([params["b_mean"], params["b_logvar"]])[:, None]  # [2L, 1]

    f32 = lambda a: a.astype(jnp.float32)
    return dict(W1=f32(W1), B1=f32(B1), W2=f32(W2), B2=f32(B2),
                WH=f32(WH), BH=f32(BH))


# ---------------------------------------------------------------------------
# Pure-JAX f32 reference matching the PyTorch forward (independent conv path)
# ---------------------------------------------------------------------------
def _torch_conv1d(x_ncl, w_oik, b):
    y = jax.lax.conv_general_dilated(
        x_ncl, w_oik, window_strides=(1,), padding=[(1, 1)],
        dimension_numbers=("NCH", "OIH", "NCH"))
    return y + b[None, :, None]


def reference_forward(x, params, eps):
    B = x.shape[0]
    xc = x[:, :, None]                                     # view(B, C, 1)
    a = jnp.maximum(_torch_conv1d(xc, params["w_conv1"], params["b_conv1"]), 0.0)
    h = jnp.tanh(_torch_conv1d(a, params["w_conv2"], params["b_conv2"]))
    h_flat = h.reshape(B, -1)                              # PyTorch flatten order
    mean = h_flat @ params["w_mean"].T + params["b_mean"]
    log_var = h_flat @ params["w_logvar"].T + params["b_logvar"]
    var = jnp.exp(0.5 * log_var)
    z = mean + eps * var
    return z, mean, var, log_var


# ---------------------------------------------------------------------------
# Demo / correctness check
# ---------------------------------------------------------------------------
if __name__ == "__main__":
    key = jax.random.PRNGKey(0)
    k_param, k_x, k_eps = jax.random.split(key, 3)

    B, input_dim, latent_dim = 256, 4, 2

    torch_params = init_params(k_param, input_dim, latent_dim)
    packed = pack_params(torch_params)

    x = jax.random.normal(k_x, (B, input_dim), dtype=jnp.float32)
    # randn_like noise sampled outside the kernel so the check is deterministic.
    # TODO(synk): optionally sample eps in-kernel (pltpu.prng_seed +
    # pltpu.stateful_normal) on the non-deterministic path to drop this input.
    eps = jax.random.normal(k_eps, (B, latent_dim), dtype=jnp.float32)

    # block_b=128 -> 2 lane-aligned grid steps (exercises the tiled path and
    # the v7x megacore split); production default picks 2048-8192-col tiles.
    z, mean, var, log_var = encoder_conv_forward(
        x, packed, eps, latent_dim=latent_dim, block_b=128)
    jax.block_until_ready((z, mean, var, log_var))

    z_r, mean_r, var_r, lv_r = reference_forward(x, torch_params, eps)

    # Storage/elementwise math are f32; TPU default-precision matmuls (kernel
    # and reference alike) are bf16-pass based, so compare at that level.
    tol = dict(atol=2e-2, rtol=2e-2)
    assert jnp.allclose(z, z_r, **tol), float(jnp.max(jnp.abs(z - z_r)))
    assert jnp.allclose(mean, mean_r, **tol), float(jnp.max(jnp.abs(mean - mean_r)))
    assert jnp.allclose(var, var_r, **tol), float(jnp.max(jnp.abs(var - var_r)))
    assert jnp.allclose(log_var, lv_r, **tol), float(jnp.max(jnp.abs(log_var - lv_r)))

    print("KERNEL_OK")
</pallas_src>

<mosaic_0001>
module attributes {stable_mosaic.version = 11 : i64} {
  func.func @encoder_conv_kernel(%arg0: i32, %arg1: memref<4x128xf32, #tpu.memory_space<vmem>>, %arg2: memref<16x4xf32, #tpu.memory_space<vmem>>, %arg3: memref<16x1xf32, #tpu.memory_space<vmem>>, %arg4: memref<48x16xf32, #tpu.memory_space<vmem>>, %arg5: memref<48x1xf32, #tpu.memory_space<vmem>>, %arg6: memref<4x48xf32, #tpu.memory_space<vmem>>, %arg7: memref<4x1xf32, #tpu.memory_space<vmem>>, %arg8: memref<2x128xf32, #tpu.memory_space<vmem>>, %arg9: memref<8x128xf32, #tpu.memory_space<vmem>>) attributes {dimension_semantics = [#tpu.dimension_semantics<parallel>], iteration_bounds = array<i64: 2>, scalar_prefetch = 0 : i64, scratch_operands = 0 : i64, tpu.core_type = #tpu.core_type<tc>, window_params = [{transform_indices = @transform_0, window_bounds = array<i64: 4, 128>}, {pipeline_mode = #tpu.pipeline_mode<synchronous>, transform_indices = @transform_1, window_bounds = array<i64: 16, 4>}, {pipeline_mode = #tpu.pipeline_mode<synchronous>, transform_indices = @transform_2, window_bounds = array<i64: 16, 1>}, {pipeline_mode = #tpu.pipeline_mode<synchronous>, transform_indices = @transform_3, window_bounds = array<i64: 48, 16>}, {pipeline_mode = #tpu.pipeline_mode<synchronous>, transform_indices = @transform_4, window_bounds = array<i64: 48, 1>}, {pipeline_mode = #tpu.pipeline_mode<synchronous>, transform_indices = @transform_5, window_bounds = array<i64: 4, 48>}, {pipeline_mode = #tpu.pipeline_mode<synchronous>, transform_indices = @transform_6, window_bounds = array<i64: 4, 1>}, {transform_indices = @transform_7, window_bounds = array<i64: 2, 128>}, {transform_indices = @transform_8, window_bounds = array<i64: 8, 128>}]} {
    %c0 = arith.constant 0 : index
    %c0_0 = arith.constant 0 : index
    %0 = vector.load %arg1[%c0, %c0_0] : memref<4x128xf32, #tpu.memory_space<vmem>>, vector<4x128xf32>
    %c0_1 = arith.constant 0 : index
    %c0_2 = arith.constant 0 : index
    %1 = vector.load %arg2[%c0_1, %c0_2] : memref<16x4xf32, #tpu.memory_space<vmem>>, vector<16x4xf32>
    %cst = arith.constant dense<0.000000e+00> : vector<16x128xf32>
    %2 = tpu.matmul %1, %0, %cst {dimension_numbers = #tpu.dot_dimension_numbers<[1], [0], [0], [1], [0, 0, 1, 1], [], []>} : vector<16x4xf32>, vector<4x128xf32>, vector<16x128xf32> -> vector<16x128xf32>
    %c0_3 = arith.constant 0 : index
    %c0_4 = arith.constant 0 : index
    %3 = vector.load %arg3[%c0_3, %c0_4] : memref<16x1xf32, #tpu.memory_space<vmem>>, vector<16x1xf32>
    %4 = vector.broadcast %3 : vector<16x1xf32> to vector<16x128xf32>
    %5 = arith.addf %2, %4 : vector<16x128xf32>
    %cst_5 = arith.constant 0.000000e+00 : f32
    %6 = vector.broadcast %cst_5 : f32 to vector<16x128xf32>
    %7 = arith.maximumf %5, %6 : vector<16x128xf32>
    %c0_6 = arith.constant 0 : index
    %c0_7 = arith.constant 0 : index
    %8 = vector.load %arg4[%c0_6, %c0_7] : memref<48x16xf32, #tpu.memory_space<vmem>>, vector<48x16xf32>
    %cst_8 = arith.constant dense<0.000000e+00> : vector<48x128xf32>
    %9 = tpu.matmul %8, %7, %cst_8 {dimension_numbers = #tpu.dot_dimension_numbers<[1], [0], [0], [1], [0, 0, 1, 1], [], []>} : vector<48x16xf32>, vector<16x128xf32>, vector<48x128xf32> -> vector<48x128xf32>
    %c0_9 = arith.constant 0 : index
    %c0_10 = arith.constant 0 : index
    %10 = vector.load %arg5[%c0_9, %c0_10] : memref<48x1xf32, #tpu.memory_space<vmem>>, vector<48x1xf32>
    %11 = vector.broadcast %10 : vector<48x1xf32> to vector<48x128xf32>
    %12 = arith.addf %9, %11 : vector<48x128xf32>
    %13 = math.tanh %12 : vector<48x128xf32>
    %c0_11 = arith.constant 0 : index
    %c0_12 = arith.constant 0 : index
    %14 = vector.load %arg6[%c0_11, %c0_12] : memref<4x48xf32, #tpu.memory_space<vmem>>, vector<4x48xf32>
    %cst_13 = arith.constant dense<0.000000e+00> : vector<4x128xf32>
    %15 = tpu.matmul %14, %13, %cst_13 {dimension_numbers = #tpu.dot_dimension_numbers<[1], [0], [0], [1], [0, 0, 1, 1], [], []>} : vector<4x48xf32>, vector<48x128xf32>, vector<4x128xf32> -> vector<4x128xf32>
    %c0_14 = arith.constant 0 : index
    %c0_15 = arith.constant 0 : index
    %16 = vector.load %arg7[%c0_14, %c0_15] : memref<4x1xf32, #tpu.memory_space<vmem>>, vector<4x1xf32>
    %17 = vector.broadcast %16 : vector<4x1xf32> to vector<4x128xf32>
    %18 = arith.addf %15, %17 : vector<4x128xf32>
    %19 = vector.extract_strided_slice %18 {offsets = [0, 0], sizes = [2, 128], strides = [1, 1]} : vector<4x128xf32> to vector<2x128xf32>
    %20 = vector.extract_strided_slice %18 {offsets = [2, 0], sizes = [2, 128], strides = [1, 1]} : vector<4x128xf32> to vector<2x128xf32>
    %cst_16 = arith.constant 5.000000e-01 : f32
    %21 = vector.broadcast %cst_16 : f32 to vector<2x128xf32>
    %22 = arith.mulf %21, %20 : vector<2x128xf32>
    %23 = math.exp %22 : vector<2x128xf32>
    %c0_17 = arith.constant 0 : index
    %c0_18 = arith.constant 0 : index
    %24 = vector.load %arg8[%c0_17, %c0_18] : memref<2x128xf32, #tpu.memory_space<vmem>>, vector<2x128xf32>
    %25 = arith.mulf %24, %23 : vector<2x128xf32>
    %26 = arith.addf %19, %25 : vector<2x128xf32>
    %27 = tpu.concatenate %26, %19, %23, %20 in 0 : vector<2x128xf32>, vector<2x128xf32>, vector<2x128xf32>, vector<2x128xf32> -> vector<8x128xf32>
    %c0_19 = arith.constant 0 : index
    %c0_20 = arith.constant 0 : index
    %28 = vector.load %arg9[%c0_19, %c0_20] : memref<8x128xf32, #tpu.memory_space<vmem>>, vector<8x128xf32>
    tpu.vector_store %arg9[%c0_19, %c0_20], %27 {strides = array<i32>} : memref<8x128xf32, #tpu.memory_space<vmem>>, vector<8x128xf32>,
    return
  }
  func.func @transform_0(%arg0: i32) -> (i32, i32) {
    %c0_i32 = arith.constant 0 : i32
    %c0_i32_0 = arith.constant 0 : i32
    return %c0_i32, %arg0 : i32, i32
  }
  func.func @transform_1(%arg0: i32) -> (i32, i32) {
    %c0_i32 = arith.constant 0 : i32
    %c0_i32_0 = arith.constant 0 : i32
    %c0_i32_1 = arith.constant 0 : i32
    return %c0_i32, %c0_i32_0 : i32, i32
  }
  func.func @transform_2(%arg0: i32) -> (i32, i32) {
    %c0_i32 = arith.constant 0 : i32
    %c0_i32_0 = arith.constant 0 : i32
    %c0_i32_1 = arith.constant 0 : i32
    return %c0_i32, %c0_i32_0 : i32, i32
  }
  func.func @transform_3(%arg0: i32) -> (i32, i32) {
    %c0_i32 = arith.constant 0 : i32
    %c0_i32_0 = arith.constant 0 : i32
    %c0_i32_1 = arith.constant 0 : i32
    return %c0_i32, %c0_i32_0 : i32, i32
  }
  func.func @transform_4(%arg0: i32) -> (i32, i32) {
    %c0_i32 = arith.constant 0 : i32
    %c0_i32_0 = arith.constant 0 : i32
    %c0_i32_1 = arith.constant 0 : i32
    return %c0_i32, %c0_i32_0 : i32, i32
  }
  func.func @transform_5(%arg0: i32) -> (i32, i32) {
    %c0_i32 = arith.constant 0 : i32
    %c0_i32_0 = arith.constant 0 : i32
    %c0_i32_1 = arith.constant 0 : i32
    return %c0_i32, %c0_i32_0 : i32, i32
  }
  func.func @transform_6(%arg0: i32) -> (i32, i32) {
    %c0_i32 = arith.constant 0 : i32
    %c0_i32_0 = arith.constant 0 : i32
    %c0_i32_1 = arith.constant 0 : i32
    return %c0_i32, %c0_i32_0 : i32, i32
  }
  func.func @transform_7(%arg0: i32) -> (i32, i32) {
    %c0_i32 = arith.constant 0 : i32
    %c0_i32_0 = arith.constant 0 : i32
    return %c0_i32, %arg0 : i32, i32
  }
  func.func @transform_8(%arg0: i32) -> (i32, i32) {
    %c0_i32 = arith.constant 0 : i32
    %c0_i32_0 = arith.constant 0 : i32
    return %c0_i32, %arg0 : i32, i32
  }
}

</mosaic_0001>

<llo_original>
// kernel: tpu_custom_call.1
$region0: #{tpu_custom_call.1}
  #allocation0 [shape = 'u32[]', space=smem, size = 0x4, offset = 0x4, fixed_abs, tag = 'smem constant byte address 0x4 - core index']
  #allocation1 [shape = 'u32[144,128]{1,0:T(1,128)}', space=vmem, size = 0x12000, scoped, tag = 'internal scratch']
  %s0 = inlined_call_operand.vmem [shape: f32[4,256], index: 0, kind: input, shape index: {}]
  %s1 = inlined_call_operand.vmem [shape: f32[16,4], index: 1, kind: input, shape index: {}]
  %s2 = inlined_call_operand.vmem [shape: f32[16,1], index: 2, kind: input, shape index: {}]
  %s3 = inlined_call_operand.vmem [shape: f32[48,16], index: 3, kind: input, shape index: {}]
  %s4 = inlined_call_operand.vmem [shape: f32[48,1], index: 4, kind: input, shape index: {}]
  %s5 = inlined_call_operand.vmem [shape: f32[4,48], index: 5, kind: input, shape index: {}]
  %s6 = inlined_call_operand.vmem [shape: f32[4,1], index: 6, kind: input, shape index: {}]
  %s7 = inlined_call_operand.vmem [shape: f32[2,256], index: 7, kind: input, shape index: {}]
  %s8 = inlined_call_operand.hbm [shape: f32[8,256], index: 8, kind: output, shape index: {}]
  %s9 = sld [smem:[#allocation0]]
  $region65: #{tpu_custom_call.1} parent=0
    _
  %s11 = ssub.s32 1, %s9
  %s12 = scalar_select 0, %s11, %s9
  $region1: #{tpu_custom_call.1} parent=0
    #allocation2 [shape = 'u8[8192]{0}', space=vmem, size = 0x2000, scoped, tag = 'output window, operand 0']
    #allocation3 [shape = 's32[2]{0}', space=sflag, size = 0x8, scoped, tag = 'scoped memory for tpu_custom_call.1']
    %13 = vsyncpa [#allocation3], 0
    %s14 = scalar_lea.sflag [#allocation3], 1
    %15 = vsyncpa %s14, 0
    loop: start=0, step=1, limit=4
    $region2: #{tpu_custom_call.1} parent=1 // loop_pre_header
      _
    $region3: #{tpu_custom_call.1} parent=1 // loop_header
      %s17 = sphi 0, %s21
      %p18 = scmp.ge.s32.totalorder %s17, 4
      %s27 = sphi 0, %s29
      %s30 = sphi 0, %s27
      %s31 = sphi 0, %s30
      %s47 = sphi 0, %s31
      %s51 = sphi 0, %s51
      %s53 = sphi 0, %s51
      %s54 = sphi 0, %s53
      %s68 = sphi 0, %s54
      %s72 = sphi 0, %s72
      %s74 = sphi 0, %s72
      %s75 = sphi 0, %s74
      %s89 = sphi 0, %s75
      %s93 = sphi 0, %s93
      %s95 = sphi 0, %s93
      %s96 = sphi 0, %s95
      %s110 = sphi 0, %s96
      %s114 = sphi 0, %s114
      %s116 = sphi 0, %s114
      %s117 = sphi 0, %s116
      %s131 = sphi 0, %s117
      %s135 = sphi 0, %s135
      %s137 = sphi 0, %s135
      %s138 = sphi 0, %s137
      %s152 = sphi 0, %s138
      %s156 = sphi 0, %s156
      %s158 = sphi 0, %s156
      %s159 = sphi 0, %s158
      %s173 = sphi 0, %s159
      %s179 = sphi 0, %s181
      %s182 = sphi 0, %s179
      %s183 = sphi 0, %s182
      %s199 = sphi 0, %s183
      %s205 = sphi 0, %s207
      %s208 = sphi 0, %s205
      %s209 = sphi 0, %s208
      %s225 = sphi 0, %s209
    $region4: #{tpu_custom_call.1} parent=1 // loop_header_branch
      %20 = sbr.rel (%p18) target = $region8
    $region5: #{tpu_custom_call.1} parent=1 // loop_body
      %s22 = ssub.s32 %s17, 1
      %s23 = ssub.s32 %s17, 2
      %s24 = sadd.s32 %s17, 1
      %s25 = ssub.s32 %s17, %s24
      %p26 = scmp.eq.s32.totalorder %s25, 0
      %s28 = sadd.s32 %s27, 1
      %s29 = scalar_select %p26, %s27, %s28
      %p32 = pneg %p26
      %p33 = scmp.eq.s32.totalorder %s17, 1
      %p34 = por %p32, %p33
      %p35 = scmp.ne.s32.totalorder %s27, %s30
      %p36 = scmp.eq.s32.totalorder %s17, 0
      %p37 = por %p35, %p36
      %p38 = scmp.ne.s32.totalorder %s27, %s30
      %p39 = scmp.eq.s32.totalorder %s22, 1
      %p40 = por %p38, %p39
      %p41 = scmp.ne.s32.totalorder %s30, %s31
      %p42 = scmp.eq.s32.totalorder %s22, 0
      %p43 = por %p41, %p42
      %p44 = scmp.ne.s32.totalorder %s30, %s31
      %p45 = scmp.eq.s32.totalorder %s23, 1
      %p46 = por %p44, %p45
      %p48 = scmp.ne.s32.totalorder %s31, %s47
      %p49 = scmp.eq.s32.totalorder %s23, 0
      %p50 = por %p48, %p49
      %s52 = sadd.s32 %s51, 1
      %p55 = scmp.eq.s32.totalorder %s17, 1
      %p56 = scmp.ne.s32.totalorder %s51, %s53
      %p57 = scmp.eq.s32.totalorder %s17, 0
      %p58 = por %p56, %p57
      %p59 = scmp.ne.s32.totalorder %s51, %s53
      %p60 = scmp.eq.s32.totalorder %s22, 1
      %p61 = por %p59, %p60
      %p62 = scmp.ne.s32.totalorder %s53, %s54
      %p63 = scmp.eq.s32.totalorder %s22, 0
      %p64 = por %p62, %p63
      %p65 = scmp.ne.s32.totalorder %s53, %s54
      %p66 = scmp.eq.s32.totalorder %s23, 1
      %p67 = por %p65, %p66
      %p69 = scmp.ne.s32.totalorder %s54, %s68
      %p70 = scmp.eq.s32.totalorder %s23, 0
      %p71 = por %p69, %p70
      %s73 = sadd.s32 %s72, 1
      %p76 = scmp.eq.s32.totalorder %s17, 1
      %p77 = scmp.ne.s32.totalorder %s72, %s74
      %p78 = scmp.eq.s32.totalorder %s17, 0
      %p79 = por %p77, %p78
      %p80 = scmp.ne.s32.totalorder %s72, %s74
      %p81 = scmp.eq.s32.totalorder %s22, 1
      %p82 = por %p80, %p81
      %p83 = scmp.ne.s32.totalorder %s74, %s75
      %p84 = scmp.eq.s32.totalorder %s22, 0
      %p85 = por %p83, %p84
      %p86 = scmp.ne.s32.totalorder %s74, %s75
      %p87 = scmp.eq.s32.totalorder %s23, 1
      %p88 = por %p86, %p87
      %p90 = scmp.ne.s32.totalorder %s75, %s89
      %p91 = scmp.eq.s32.totalorder %s23, 0
      %p92 = por %p90, %p91
      %s94 = sadd.s32 %s93, 1
      %p97 = scmp.eq.s32.totalorder %s17, 1
      %p98 = scmp.ne.s32.totalorder %s93, %s95
      %p99 = scmp.eq.s32.totalorder %s17, 0
      %p100 = por %p98, %p99
      %p101 = scmp.ne.s32.totalorder %s93, %s95
      %p102 = scmp.eq.s32.totalorder %s22, 1
      %p103 = por %p101, %p102
      %p104 = scmp.ne.s32.totalorder %s95, %s96
      %p105 = scmp.eq.s32.totalorder %s22, 0
      %p106 = por %p104, %p105
      %p107 = scmp.ne.s32.totalorder %s95, %s96
      %p108 = scmp.eq.s32.totalorder %s23, 1
      %p109 = por %p107, %p108
      %p111 = scmp.ne.s32.totalorder %s96, %s110
      %p112 = scmp.eq.s32.totalorder %s23, 0
      %p113 = por %p111, %p112
      %s115 = sadd.s32 %s114, 1
      %p118 = scmp.eq.s32.totalorder %s17, 1
      %p119 = scmp.ne.s32.totalorder %s114, %s116
      %p120 = scmp.eq.s32.totalorder %s17, 0
      %p121 = por %p119, %p120
      %p122 = scmp.ne.s32.totalorder %s114, %s116
      %p123 = scmp.eq.s32.totalorder %s22, 1
      %p124 = por %p122, %p123
      %p125 = scmp.ne.s32.totalorder %s116, %s117
      %p126 = scmp.eq.s32.totalorder %s22, 0
      %p127 = por %p125, %p126
      %p128 = scmp.ne.s32.totalorder %s116, %s117
      %p129 = scmp.eq.s32.totalorder %s23, 1
      %p130 = por %p128, %p129
      %p132 = scmp.ne.s32.totalorder %s117, %s131
      %p133 = scmp.eq.s32.totalorder %s23, 0
      %p134 = por %p132, %p133
      %s136 = sadd.s32 %s135, 1
      %p139 = scmp.eq.s32.totalorder %s17, 1
      %p140 = scmp.ne.s32.totalorder %s135, %s137
      %p141 = scmp.eq.s32.totalorder %s17, 0
      %p142 = por %p140, %p141
      %p143 = scmp.ne.s32.totalorder %s135, %s137
      %p144 = scmp.eq.s32.totalorder %s22, 1
      %p145 = por %p143, %p144
      %p146 = scmp.ne.s32.totalorder %s137, %s138
      %p147 = scmp.eq.s32.totalorder %s22, 0
      %p148 = por %p146, %p147
      %p149 = scmp.ne.s32.totalorder %s137, %s138
      %p150 = scmp.eq.s32.totalorder %s23, 1
      %p151 = por %p149, %p150
      %p153 = scmp.ne.s32.totalorder %s138, %s152
      %p154 = scmp.eq.s32.totalorder %s23, 0
      %p155 = por %p153, %p154
      %s157 = sadd.s32 %s156, 1
      %p160 = scmp.eq.s32.totalorder %s17, 1
      %p161 = scmp.ne.s32.totalorder %s156, %s158
      %p162 = scmp.eq.s32.totalorder %s17, 0
      %p163 = por %p161, %p162
      %p164 = scmp.ne.s32.totalorder %s156, %s158
      %p165 = scmp.eq.s32.totalorder %s22, 1
      %p166 = por %p164, %p165
      %p167 = scmp.ne.s32.totalorder %s158, %s159
      %p168 = scmp.eq.s32.totalorder %s22, 0
      %p169 = por %p167, %p168
      %p170 = scmp.ne.s32.totalorder %s158, %s159
      %p171 = scmp.eq.s32.totalorder %s23, 1
      %p172 = por %p170, %p171
      %p174 = scmp.ne.s32.totalorder %s159, %s173
      %p175 = scmp.eq.s32.totalorder %s23, 0
      %p176 = por %p174, %p175
      %s177 = ssub.s32 %s17, %s24
      %p178 = scmp.eq.s32.totalorder %s177, 0
      %s180 = sadd.s32 %s179, 1
      %s181 = scalar_select %p178, %s179, %s180
      %p184 = pneg %p178
      %p185 = scmp.eq.s32.totalorder %s17, 1
      %p186 = por %p184, %p185
      %p187 = scmp.ne.s32.totalorder %s179, %s182
      %p188 = scmp.eq.s32.totalorder %s17, 0
      %p189 = por %p187, %p188
      %p190 = scmp.ne.s32.totalorder %s179, %s182
      %p191 = scmp.eq.s32.totalorder %s22, 1
      %p192 = por %p190, %p191
      %p193 = scmp.ne.s32.totalorder %s182, %s183
      %p194 = scmp.eq.s32.totalorder %s22, 0
      %p195 = por %p193, %p194
      %p196 = scmp.ne.s32.totalorder %s182, %s183
      %p197 = scmp.eq.s32.totalorder %s23, 1
      %p198 = por %p196, %p197
      %p200 = scmp.ne.s32.totalorder %s183, %s199
      %p201 = scmp.eq.s32.totalorder %s23, 0
      %p202 = por %p200, %p201
      %s203 = ssub.s32 %s17, %s24
      %p204 = scmp.eq.s32.totalorder %s203, 0
      %s206 = sadd.s32 %s205, 1
      %s207 = scalar_select %p204, %s205, %s206
      %p210 = pneg %p204
      %p211 = scmp.eq.s32.totalorder %s17, 1
      %p212 = por %p210, %p211
      %p213 = scmp.ne.s32.totalorder %s205, %s208
      %p214 = scmp.eq.s32.totalorder %s17, 0
      %p215 = por %p213, %p214
      %p216 = scmp.ne.s32.totalorder %s205, %s208
      %p217 = scmp.eq.s32.totalorder %s22, 1
      %p218 = por %p216, %p217
      %p219 = scmp.ne.s32.totalorder %s208, %s209
      %p220 = scmp.eq.s32.totalorder %s22, 0
      %p221 = por %p219, %p220
      %p222 = scmp.ne.s32.totalorder %s208, %s209
      %p223 = scmp.eq.s32.totalorder %s23, 1
      %p224 = por %p222, %p223
      %p226 = scmp.ne.s32.totalorder %s209, %s225
      %p227 = scmp.eq.s32.totalorder %s23, 0
      %p228 = por %p226, %p227
      %p229 = scmp.le.s32.totalorder 1, %s17
      %p230 = scmp.lt.s32.totalorder %s17, 3
      %p231 = pnand %p229, %p230
      %p232 = pneg %p231
      // Predicated region
      $region9: #{tpu_custom_call.1} parent=5 // pred_check
        _
      $region10: #{tpu_custom_call.1} parent=5 // pred_check_branch
        %234 = sbr.rel (%p231) target = $region12
      $region11: #{tpu_custom_call.1} parent=5 // pred_region
        %s235 = ssub.s32 %s17, 1
        // Predicated region
        $region13: #{tpu_custom_call.1} parent=11 // pred_check
          %p236 = pneg %p64
        $region14: #{tpu_custom_call.1} parent=11 // pred_check_branch
          %238 = sbr.rel (%p236) target = $region16
        $region15: #{tpu_custom_call.1} parent=11 // pred_region
          _
        $region16: #{tpu_custom_call.1} parent=11 // pred_fallthru
          _
        // Predicated region
        $region17: #{tpu_custom_call.1} parent=11 // pred_check
          %p239 = pneg %p85
        $region18: #{tpu_custom_call.1} parent=11 // pred_check_branch
          %241 = sbr.rel (%p239) target = $region20
        $region19: #{tpu_custom_call.1} parent=11 // pred_region
          _
        $region20: #{tpu_custom_call.1} parent=11 // pred_fallthru
          _
        // Predicated region
        $region21: #{tpu_custom_call.1} parent=11 // pred_check
          %p242 = pneg %p106
        $region22: #{tpu_custom_call.1} parent=11 // pred_check_branch
          %244 = sbr.rel (%p242) target = $region24
        $region23: #{tpu_custom_call.1} parent=11 // pred_region
          _
        $region24: #{tpu_custom_call.1} parent=11 // pred_fallthru
          _
        // Predicated region
        $region25: #{tpu_custom_call.1} parent=11 // pred_check
          %p245 = pneg %p127
        $region26: #{tpu_custom_call.1} parent=11 // pred_check_branch
          %247 = sbr.rel (%p245) target = $region28
        $region27: #{tpu_custom_call.1} parent=11 // pred_region
          _
        $region28: #{tpu_custom_call.1} parent=11 // pred_fallthru
          _
        // Predicated region
        $region29: #{tpu_custom_call.1} parent=11 // pred_check
          %p248 = pneg %p148
        $region30: #{tpu_custom_call.1} parent=11 // pred_check_branch
          %250 = sbr.rel (%p248) target = $region32
        $region31: #{tpu_custom_call.1} parent=11 // pred_region
          _
        $region32: #{tpu_custom_call.1} parent=11 // pred_fallthru
          _
        // Predicated region
        $region33: #{tpu_custom_call.1} parent=11 // pred_check
          %p251 = pneg %p169
        $region34: #{tpu_custom_call.1} parent=11 // pred_check_branch
          %253 = sbr.rel (%p251) target = $region36
        $region35: #{tpu_custom_call.1} parent=11 // pred_region
          _
        $region36: #{tpu_custom_call.1} parent=11 // pred_fallthru
          _
      $region12: #{tpu_custom_call.1} parent=5 // pred_fallthru
        _
      %p254 = scmp.lt.s32.totalorder %s17, 2
      // Predicated region
      $region37: #{tpu_custom_call.1} parent=5 // pred_check
        %p255 = pneg %p254
      $region38: #{tpu_custom_call.1} parent=5 // pred_check_branch
        %257 = sbr.rel (%p255) target = $region40
      $region39: #{tpu_custom_call.1} parent=5 // pred_region
        // Predicated region
        $region41: #{tpu_custom_call.1} parent=39 // pred_check
          %p258 = pneg %p37
        $region42: #{tpu_custom_call.1} parent=39 // pred_check_branch
          %260 = sbr.rel (%p258) target = $region44
        $region43: #{tpu_custom_call.1} parent=39 // pred_region
          %p261 = scmp.lt.s32.totalorder %s17, 1
          %s262 = scalar_select %p261, %s17, 1
          %s263 = smul.addr %s262, 4
          %s264 = scalar_lea.vmem %s0, %s263
        $region44: #{tpu_custom_call.1} parent=39 // pred_fallthru
          _
        // Predicated region
        $region45: #{tpu_custom_call.1} parent=39 // pred_check
          %p265 = pneg %p189
        $region46: #{tpu_custom_call.1} parent=39 // pred_check_branch
          %267 = sbr.rel (%p265) target = $region48
        $region47: #{tpu_custom_call.1} parent=39 // pred_region
          %p268 = scmp.lt.s32.totalorder %s17, 1
          %s269 = scalar_select %p268, %s17, 1
          %s270 = smul.addr %s269, 2
          %s271 = scalar_lea.vmem %s7, %s270
        $region48: #{tpu_custom_call.1} parent=39 // pred_fallthru
          _
      $region40: #{tpu_custom_call.1} parent=5 // pred_fallthru
        _
      %p272 = scmp.le.s32.totalorder 1, %s17
      %p273 = scmp.lt.s32.totalorder %s17, 3
      %p274 = pnand %p272, %p273
      %p275 = pneg %p274
      // Predicated region
      $region49: #{tpu_custom_call.1} parent=5 // pred_check
        _
      $region50: #{tpu_custom_call.1} parent=5 // pred_check_branch
        %277 = sbr.rel (%p274) target = $region52
      $region51: #{tpu_custom_call.1} parent=5 // pred_region
        %s278 = ssub.s32 %s17, 1
        %p279 = scmp.lt.s32.totalorder %s22, 1
        %s280 = scalar_select %p279, %s22, 1
        %s281 = smul.addr %s280, 4
        %s282 = scalar_lea.vmem %s0, %s281
        %p283 = pneg %p43
        %p284 = pneg %p40
        %p285 = pneg %p64
        %p286 = pneg %p61
        %p287 = pneg %p85
        %p288 = pneg %p82
        %p289 = pneg %p106
        %p290 = pneg %p103
        %p291 = pneg %p127
        %p292 = pneg %p124
        %p293 = pneg %p148
        %p294 = pneg %p145
        %p295 = pneg %p169
        %p296 = pneg %p166
        %p297 = scmp.lt.s32.totalorder %s22, 1
        %s298 = scalar_select %p297, %s22, 1
        %s299 = smul.addr %s298, 2
        %s300 = scalar_lea.vmem %s7, %s299
        %p301 = pneg %p195
        %p302 = pneg %p192
        %p303 = pneg %p221
        %p304 = pneg %p218
        %s305 = sand.u32 %s208, 1
        %s306 = scalar_lea.sflag [#allocation3], %s305
        %s307 = sand.u32 %s208, 1
        %s308 = smul.addr %s307, 8
        %s309 = scalar_lea.vmem [#allocation2], %s308
        %p310 = scmp.lt.s32.totalorder %s22, 1
        %s311 = scalar_select %p310, %s22, 1
        %s312 = smul.addr %s311, 4
        %s313 = scalar_lea.vmem %s0, %s312
        %p314 = scmp.lt.s32.totalorder %s22, 1
        %s315 = scalar_select %p314, %s22, 1
        %s316 = smul.addr %s315, 2
        %s317 = scalar_lea.vmem %s7, %s316
        %v318 = vld [vmem:[%s313] sm:$0xf]
        %v319 = vld [vmem:[%s1] sm:$0xff]
        %v320 = vld [vmem:[%s1 + $0x8] sm:$0xff]
        %v321 = vld [vmem:[%s2] sm:$0xff]
        %v322 = vld [vmem:[%s2 + $0x8] sm:$0xff]
        %324 = vset.pattern.permute.xlu0 0
        %325 = vperm.xlu0 %324, %v321
        %v326 = vpop.permute.xlu0 %325
        %329 = vset.pattern.permute.xlu0 0
        %330 = vperm.xlu0 %329, %v322
        %v331 = vpop.permute.xlu0 %330
        %vm333 = vcmask 31744
        %v335 = vsel %vm333, %v319, 0
        %v338 = vsel %vm333, %v320, 0
        %vm340 = vcmask 1043456
        %v342 = vsel %vm340, %v318, 0
        %344 = vmatprep.subr.mxu0 0.0
        %345 = vmatpush1.msra.mxu0 %v342
        %346 = vmatprep.subr.mxu0 0.0
        %347 = vmatpush1.msra.mxu0 0.0
        %348 = vmatprep.subr.mxu0 0.0
        %349 = vmatpush1.msra.mxu0 0.0
        %350 = vmatprep.subr.mxu0 0.0
        %351 = vmatpush1.msra.mxu0 0.0
        %352 = vmatprep.subr.mxu0 0.0
        %353 = vmatpush1.msra.mxu0 0.0
        %354 = vmatprep.subr.mxu0 0.0
        %355 = vmatpush1.msra.mxu0 0.0
        %356 = vmatprep.subr.mxu0 0.0
        %357 = vmatpush1.msra.mxu0 0.0
        %358 = vmatprep.subr.mxu0 0.0
        %359 = vmatpush1.msra.mxu0 0.0
        %360 = vmatprep.subr.mxu0 0.0
        %361 = vmatpush1.msra.mxu0 0.0
        %362 = vmatprep.subr.mxu0 0.0
        %363 = vmatpush1.msra.mxu0 0.0
        %364 = vmatprep.subr.mxu0 0.0
        %365 = vmatpush1.msra.mxu0 0.0
        %366 = vmatprep.subr.mxu0 0.0
        %367 = vmatpush1.msra.mxu0 0.0
        %368 = vmatprep.subr.mxu0 0.0
        %369 = vmatpush1.msra.mxu0 0.0
        %370 = vmatprep.subr.mxu0 0.0
        %371 = vmatpush1.msra.mxu0 0.0
        %372 = vmatprep.subr.mxu0 0.0
        %373 = vmatpush1.msra.mxu0 0.0
        %374 = vmatprep.subr.mxu0 0.0
        %375 = vmatpush1.msra.mxu0 0.0
        %376 = vmatprep.subr.mxu0 0.0
        %377 = vmatpush1.msra.mxu0 0.0
        %378 = vmatprep.subr.mxu0 0.0
        %379 = vmatpush1.msra.mxu0 0.0
        %380 = vmatprep.subr.mxu0 0.0
        %381 = vmatpush1.msra.mxu0 0.0
        %382 = vmatprep.subr.mxu0 0.0
        %383 = vmatpush1.msra.mxu0 0.0
        %384 = vmatprep.subr.mxu0 0.0
        %385 = vmatpush1.msra.mxu0 0.0
        %386 = vmatprep.subr.mxu0 0.0
        %387 = vmatpush1.msra.mxu0 0.0
        %388 = vmatprep.subr.mxu0 0.0
        %389 = vmatpush1.msra.mxu0 0.0
        %390 = vmatprep.subr.mxu0 0.0
        %391 = vmatpush1.msra.mxu0 0.0
        %392 = vmatprep.subr.mxu0 0.0
        %393 = vmatpush1.msra.mxu0 0.0
        %394 = vmatprep.subr.mxu0 0.0
        %395 = vmatpush1.msra.mxu0 0.0
        %396 = vmatprep.subr.mxu0 0.0
        %397 = vmatpush1.msra.mxu0 0.0
        %398 = vmatprep.subr.mxu0 0.0
        %399 = vmatpush1.msra.mxu0 0.0
        %400 = vmatprep.subr.mxu0 0.0
        %401 = vmatpush1.msra.mxu0 0.0
        %402 = vmatprep.subr.mxu0 0.0
        %403 = vmatpush1.msra.mxu0 0.0
        %404 = vmatprep.subr.mxu0 0.0
        %405 = vmatpush1.msra.mxu0 0.0
        %406 = vmatprep.subr.mxu0 0.0
        %407 = vmatpush1.msra.mxu0 0.0
        %408 = vmatprep.mubr.f32.mxu0 0.0
        %409 = vmatmul.mubr.f32.gmra.mrb[0].mxu0 %v335
        %v410 = vpop.f32.mrb[0].mxu0
        %v411 = vadd.f32 %v326, %v410
        %v412 = vpop.f32.mrb[0].mxu0
        %413 = vmatprep.mubr.f32.mxu0 0.0
        %414 = vmatmul.mubr.f32.gmra.mrb[0].mxu0 %v338
        %v415 = vpop.f32.mrb[0].mxu0
        %v416 = vadd.f32 %v331, %v415
        %v417 = vpop.f32.mrb[0].mxu0
        %418 = vdwg.mxu0
        %v419 = vmax.f32 %v411, 0.0
        %v420 = vmax.f32 %v416, 0.0
        %v421 = vld [vmem:[%s3] sm:$0xff]
        %v422 = vld [vmem:[%s3 + $0x8] sm:$0xff]
        %v423 = vld [vmem:[%s3 + $0x10] sm:$0xff]
        %v424 = vld [vmem:[%s3 + $0x18] sm:$0xff]
        %v425 = vld [vmem:[%s3 + $0x20] sm:$0xff]
        %v426 = vld [vmem:[%s3 + $0x28] sm:$0xff]
        %v427 = vld [vmem:[%s4] sm:$0xff]
        %v428 = vld [vmem:[%s4 + $0x8] sm:$0xff]
        %v429 = vld [vmem:[%s4 + $0x10] sm:$0xff]
        %v430 = vld [vmem:[%s4 + $0x18] sm:$0xff]
        %v431 = vld [vmem:[%s4 + $0x20] sm:$0xff]
        %v432 = vld [vmem:[%s4 + $0x28] sm:$0xff]
        %434 = vset.pattern.permute.xlu0 0
        %435 = vperm.xlu0 %434, %v427
        %v436 = vpop.permute.xlu0 %435
        %439 = vset.pattern.permute.xlu0 0
        %440 = vperm.xlu0 %439, %v428
        %v441 = vpop.permute.xlu0 %440
        %444 = vset.pattern.permute.xlu0 0
        %445 = vperm.xlu0 %444, %v429
        %v446 = vpop.permute.xlu0 %445
        %449 = vset.pattern.permute.xlu0 0
        %450 = vperm.xlu0 %449, %v430
        %v451 = vpop.permute.xlu0 %450
        %454 = vset.pattern.permute.xlu0 0
        %455 = vperm.xlu0 %454, %v431
        %v456 = vpop.permute.xlu0 %455
        %459 = vset.pattern.permute.xlu0 0
        %460 = vperm.xlu0 %459, %v432
        %v461 = vpop.permute.xlu0 %460
        %vm463 = vcmask 130048
        %v465 = vsel %vm463, %v421, 0
        %v468 = vsel %vm463, %v422, 0
        %v471 = vsel %vm463, %v423, 0
        %v474 = vsel %vm463, %v424, 0
        %v477 = vsel %vm463, %v425, 0
        %v480 = vsel %vm463, %v426, 0
        %482 = vmatprep.subr.mxu0 0.0
        %483 = vmatpush1.msra.mxu0 %v419
        %484 = vmatprep.subr.mxu0 0.0
        %485 = vmatpush1.msra.mxu0 %v420
        %486 = vmatprep.subr.mxu0 0.0
        %487 = vmatpush1.msra.mxu0 0.0
        %488 = vmatprep.subr.mxu0 0.0
        %489 = vmatpush1.msra.mxu0 0.0
        %490 = vmatprep.subr.mxu0 0.0
        %491 = vmatpush1.msra.mxu0 0.0
        %492 = vmatprep.subr.mxu0 0.0
        %493 = vmatpush1.msra.mxu0 0.0
        %494 = vmatprep.subr.mxu0 0.0
        %495 = vmatpush1.msra.mxu0 0.0
        %496 = vmatprep.subr.mxu0 0.0
        %497 = vmatpush1.msra.mxu0 0.0
        %498 = vmatprep.subr.mxu0 0.0
        %499 = vmatpush1.msra.mxu0 0.0
        %500 = vmatprep.subr.mxu0 0.0
        %501 = vmatpush1.msra.mxu0 0.0
        %502 = vmatprep.subr.mxu0 0.0
        %503 = vmatpush1.msra.mxu0 0.0
        %504 = vmatprep.subr.mxu0 0.0
        %505 = vmatpush1.msra.mxu0 0.0
        %506 = vmatprep.subr.mxu0 0.0
        %507 = vmatpush1.msra.mxu0 0.0
        %508 = vmatprep.subr.mxu0 0.0
        %509 = vmatpush1.msra.mxu0 0.0
        %510 = vmatprep.subr.mxu0 0.0
        %511 = vmatpush1.msra.mxu0 0.0
        %512 = vmatprep.subr.mxu0 0.0
        %513 = vmatpush1.msra.mxu0 0.0
        %514 = vmatprep.subr.mxu0 0.0
        %515 = vmatpush1.msra.mxu0 0.0
        %516 = vmatprep.subr.mxu0 0.0
        %517 = vmatpush1.msra.mxu0 0.0
        %518 = vmatprep.subr.mxu0 0.0
        %519 = vmatpush1.msra.mxu0 0.0
        %520 = vmatprep.subr.mxu0 0.0
        %521 = vmatpush1.msra.mxu0 0.0
        %522 = vmatprep.subr.mxu0 0.0
        %523 = vmatpush1.msra.mxu0 0.0
        %524 = vmatprep.subr.mxu0 0.0
        %525 = vmatpush1.msra.mxu0 0.0
        %526 = vmatprep.subr.mxu0 0.0
        %527 = vmatpush1.msra.mxu0 0.0
        %528 = vmatprep.subr.mxu0 0.0
        %529 = vmatpush1.msra.mxu0 0.0
        %530 = vmatprep.subr.mxu0 0.0
        %531 = vmatpush1.msra.mxu0 0.0
        %532 = vmatprep.subr.mxu0 0.0
        %533 = vmatpush1.msra.mxu0 0.0
        %534 = vmatprep.subr.mxu0 0.0
        %535 = vmatpush1.msra.mxu0 0.0
        %536 = vmatprep.subr.mxu0 0.0
        %537 = vmatpush1.msra.mxu0 0.0
        %538 = vmatprep.subr.mxu0 0.0
        %539 = vmatpush1.msra.mxu0 0.0
        %540 = vmatprep.subr.mxu0 0.0
        %541 = vmatpush1.msra.mxu0 0.0
        %542 = vmatprep.subr.mxu0 0.0
        %543 = vmatpush1.msra.mxu0 0.0
        %544 = vmatprep.subr.mxu0 0.0
        %545 = vmatpush1.msra.mxu0 0.0
        %546 = vmatprep.mubr.f32.mxu0 0.0
        %547 = vmatmul.mubr.f32.gmra.mrb[0].mxu0 %v465
        %v548 = vpop.f32.mrb[0].mxu0
        %v549 = vadd.f32 %v436, %v548
        %v550 = vpop.f32.mrb[0].mxu0
        %551 = vmatprep.mubr.f32.mxu0 0.0
        %552 = vmatmul.mubr.f32.gmra.mrb[0].mxu0 %v468
        %v553 = vpop.f32.mrb[0].mxu0
        %v554 = vadd.f32 %v441, %v553
        %v555 = vpop.f32.mrb[0].mxu0
        %556 = vmatprep.mubr.f32.mxu0 0.0
        %557 = vmatmul.mubr.f32.gmra.mrb[0].mxu0 %v471
        %v558 = vpop.f32.mrb[0].mxu0
        %v559 = vadd.f32 %v446, %v558
        %v560 = vpop.f32.mrb[0].mxu0
        %561 = vmatprep.mubr.f32.mxu0 0.0
        %562 = vmatmul.mubr.f32.gmra.mrb[0].mxu0 %v474
        %v563 = vpop.f32.mrb[0].mxu0
        %v564 = vadd.f32 %v451, %v563
        %v565 = vpop.f32.mrb[0].mxu0
        %566 = vmatprep.mubr.f32.mxu0 0.0
        %567 = vmatmul.mubr.f32.gmra.mrb[0].mxu0 %v477
        %v568 = vpop.f32.mrb[0].mxu0
        %v569 = vadd.f32 %v456, %v568
        %v570 = vpop.f32.mrb[0].mxu0
        %571 = vmatprep.mubr.f32.mxu0 0.0
        %572 = vmatmul.mubr.f32.gmra.mrb[0].mxu0 %v480
        %v573 = vpop.f32.mrb[0].mxu0
        %v574 = vadd.f32 %v461, %v573
        %v575 = vpop.f32.mrb[0].mxu0
        %576 = vdwg.mxu0
        %v577 = vtanh.pop %v549
        %v578 = vtanh.pop %v554
        %v579 = vtanh.pop %v559
        %v580 = vtanh.pop %v564
        %v581 = vtanh.pop %v569
        %v582 = vtanh.pop %v574
        %v583 = vld [vmem:[%s5] sm:$0xf]
        %v584 = vld [vmem:[%s6] sm:$0xf]
        %586 = vset.pattern.permute.xlu0 0
        %587 = vperm.xlu0 %586, %v584
        %v588 = vpop.permute.xlu0 %587
        %vm590 = vcmask 392192
        %v592 = vsel %vm590, %v583, 0
        %594 = vmatprep.subr.mxu0 0.0
        %595 = vmatpush1.msra.mxu0 %v577
        %596 = vmatprep.subr.mxu0 0.0
        %597 = vmatpush1.msra.mxu0 %v578
        %598 = vmatprep.subr.mxu0 0.0
        %599 = vmatpush1.msra.mxu0 %v579
        %600 = vmatprep.subr.mxu0 0.0
        %601 = vmatpush1.msra.mxu0 %v580
        %602 = vmatprep.subr.mxu0 0.0
        %603 = vmatpush1.msra.mxu0 %v581
        %604 = vmatprep.subr.mxu0 0.0
        %605 = vmatpush1.msra.mxu0 %v582
        %606 = vmatprep.subr.mxu0 0.0
        %607 = vmatpush1.msra.mxu0 0.0
        %608 = vmatprep.subr.mxu0 0.0
        %609 = vmatpush1.msra.mxu0 0.0
        %610 = vmatprep.subr.mxu0 0.0
        %611 = vmatpush1.msra.mxu0 0.0
        %612 = vmatprep.subr.mxu0 0.0
        %613 = vmatpush1.msra.mxu0 0.0
        %614 = vmatprep.subr.mxu0 0.0
        %615 = vmatpush1.msra.mxu0 0.0
        %616 = vmatprep.subr.mxu0 0.0
        %617 = vmatpush1.msra.mxu0 0.0
        %618 = vmatprep.subr.mxu0 0.0
        %619 = vmatpush1.msra.mxu0 0.0
        %620 = vmatprep.subr.mxu0 0.0
        %621 = vmatpush1.msra.mxu0 0.0
        %622 = vmatprep.subr.mxu0 0.0
        %623 = vmatpush1.msra.mxu0 0.0
        %624 = vmatprep.subr.mxu0 0.0
        %625 = vmatpush1.msra.mxu0 0.0
        %626 = vmatprep.subr.mxu0 0.0
        %627 = vmatpush1.msra.mxu0 0.0
        %628 = vmatprep.subr.mxu0 0.0
        %629 = vmatpush1.msra.mxu0 0.0
        %630 = vmatprep.subr.mxu0 0.0
        %631 = vmatpush1.msra.mxu0 0.0
        %632 = vmatprep.subr.mxu0 0.0
        %633 = vmatpush1.msra.mxu0 0.0
        %634 = vmatprep.subr.mxu0 0.0
        %635 = vmatpush1.msra.mxu0 0.0
        %636 = vmatprep.subr.mxu0 0.0
        %637 = vmatpush1.msra.mxu0 0.0
        %638 = vmatprep.subr.mxu0 0.0
        %639 = vmatpush1.msra.mxu0 0.0
        %640 = vmatprep.subr.mxu0 0.0
        %641 = vmatpush1.msra.mxu0 0.0
        %642 = vmatprep.subr.mxu0 0.0
        %643 = vmatpush1.msra.mxu0 0.0
        %644 = vmatprep.subr.mxu0 0.0
        %645 = vmatpush1.msra.mxu0 0.0
        %646 = vmatprep.subr.mxu0 0.0
        %647 = vmatpush1.msra.mxu0 0.0
        %648 = vmatprep.subr.mxu0 0.0
        %649 = vmatpush1.msra.mxu0 0.0
        %650 = vmatprep.subr.mxu0 0.0
        %651 = vmatpush1.msra.mxu0 0.0
        %652 = vmatprep.subr.mxu0 0.0
        %653 = vmatpush1.msra.mxu0 0.0
        %654 = vmatprep.subr.mxu0 0.0
        %655 = vmatpush1.msra.mxu0 0.0
        %656 = vmatprep.subr.mxu0 0.0
        %657 = vmatpush1.msra.mxu0 0.0
        %658 = vmatprep.mubr.f32.mxu0 0.0
        %659 = vmatmul.mubr.f32.gmra.mrb[0].mxu0 %v592
        %v660 = vpop.f32.mrb[0].mxu0
        %v661 = vadd.f32 %v588, %v660
        %v662 = vpop.f32.mrb[0].mxu0
        %663 = vdwg.mxu0
        %v664 = vmul.f32 %v661, 0.5
        %v665 = vmul.f32 %v664, 1.442695
        %v666 = vpow.pop %v665
        %v667 = vld [vmem:[%s317] sm:$0x3]
        %v669 = vrot.slane %v666, 2
        %v671 = vmul.f32 %v667, %v669
        %v672 = vadd.f32 %v661, %v671
        %v674 = vrot.slane %v661, 6
        %v676 = vrot.slane %v666, 6
        %v678 = vrot.slane %v661, 4
        %vm680 = vcmask 1041408
        %v681 = vsel %vm680, %v672, %v674
        %v682 = vsel %vm340, %v681, %v676
        %vm683 = vcmask 1045504
        %v684 = vsel %vm683, %v682, %v678
        %685 = vst [vmem:[%s309] sm:$0xff] %v684
        %s686 = sand.u32 %s208, 1
        %s687 = scalar_lea.sflag [#allocation3], %s686
        %s688 = sand.u32 %s208, 1
        %s689 = smul.addr %s688, 8
        %s690 = scalar_lea.vmem [#allocation2], %s689
        // Predicated region
        $region53: #{tpu_custom_call.1} parent=51 // pred_check
          %p691 = pneg %p218
        $region54: #{tpu_custom_call.1} parent=51 // pred_check_branch
          %693 = sbr.rel (%p691) target = $region56
        $region55: #{tpu_custom_call.1} parent=51 // pred_region
          %s695 = ssub.s32 128, 128
          %696 = vsyncadd %s687, %s695
          %s697 = smul.addr %s22, 128
          %s698 = scalar_lea.hbm %s8, %s697
          %s700 = sshll.u32 %s690, 4
          %s701 = int_to_ptr.vmem [resolvable:$true] %s700
          %703 = dma.vmem_to_hbm [thread:$0]  %s701, 128, %s698, %s687
        $region56: #{tpu_custom_call.1} parent=51 // pred_fallthru
          _
      $region52: #{tpu_custom_call.1} parent=5 // pred_fallthru
        _
      %p704 = scmp.le.s32.totalorder 2, %s17
      // Predicated region
      $region57: #{tpu_custom_call.1} parent=5 // pred_check
        %p705 = pneg %p704
      $region58: #{tpu_custom_call.1} parent=5 // pred_check_branch
        %707 = sbr.rel (%p705) target = $region60
      $region59: #{tpu_custom_call.1} parent=5 // pred_region
        %s708 = ssub.s32 %s17, 2
        // Predicated region
        $region61: #{tpu_custom_call.1} parent=59 // pred_check
          %p709 = pneg %p224
        $region62: #{tpu_custom_call.1} parent=59 // pred_check_branch
          %711 = sbr.rel (%p709) target = $region64
        $region63: #{tpu_custom_call.1} parent=59 // pred_region
          %s712 = sand.u32 %s209, 1
          %s713 = scalar_lea.sflag [#allocation3], %s712
          %s714 = sand.u32 %s209, 1
          %s715 = smul.addr %s714, 8
          %s716 = scalar_lea.vmem [#allocation2], %s715
          %717 = dma.done %s713, 128
        $region64: #{tpu_custom_call.1} parent=59 // pred_fallthru
          _
      $region60: #{tpu_custom_call.1} parent=5 // pred_fallthru
        _
    $region6: #{tpu_custom_call.1} parent=1 // loop_footer
      %s21 = sadd.s32 1, %s17
    $region7: #{tpu_custom_call.1} parent=1 // loop_footer_branch
      %16 = sbr.rel target = $region3
    $region8: #{tpu_custom_call.1} parent=1 // loop_exit
      _
    %718 = vsyncpa [#allocation3], 1
    %s719 = scalar_lea.sflag [#allocation3], 1
    %720 = vsyncpa %s719, 1

</llo_original>
